<compile_context>
chip_gen: v7x
topology: tpu7x:2x2x1
jax: 0.10.0
libtpu: 0.0.40
codegen_flags: <defaults>
</compile_context>

<pallas_src>
import jax
import jax.numpy as jnp
from jax.experimental import pallas as pl
from jax.experimental.pallas import tpu as pltpu


# --------------------------------------------------------------------------- #
# Kernel
# --------------------------------------------------------------------------- #
def _mean_masked_pooling_kernel(x_ref, mask_ref, inv_len_ref, o_ref, acc_ref):
    # x_ref:       (TB, TS, TH)  VMEM, native dtype
    # mask_ref:    (TB, 1, TS)   VMEM, x's dtype, values 0.0 / 1.0
    # inv_len_ref: (TB, 1)       VMEM, f32, exact 1 / max(lengths, 1)
    # o_ref:       (TB, TH)      output block
    # acc_ref:     (TB, TH)      f32 scratch: masked running sum over S
    s = pl.program_id(2)

    @pl.when(s == 0)
    def _init():
        acc_ref[...] = jnp.zeros_like(acc_ref)

    # Mask-apply + sequence reduction fused as one batched MXU contraction:
    # (TB, 1, TS) @ (TB, TS, TH) -> (TB, 1, TH), accumulated in f32.
    part = jnp.einsum(
        "bks,bsh->bkh", mask_ref[...], x_ref[...],
        preferred_element_type=jnp.float32,
    )
    acc_ref[...] += part[:, 0, :]

    @pl.when(s == pl.num_programs(2) - 1)
    def _finalize():
        # Exact reciprocal precomputed in the wrapper.  Rows with lengths == 0
        # have an all-zero masked sum, matching the reference's scaling = 1.
        o_ref[...] = (acc_ref[...] * inv_len_ref[...]).astype(o_ref.dtype)


# --------------------------------------------------------------------------- #
# Tile / budget selection (generation-aware)
# --------------------------------------------------------------------------- #
def _round_up(x, m):
    return (x + m - 1) // m * m


def _vmem_budgets():
    """Return (x_tile_budget_bytes, vmem_limit_bytes, two_core_hint)."""
    vmem = 64 * 1024 * 1024  # conservative default (v7x-sized)
    try:
        info = pltpu.get_tpu_info()
        vmem = int(getattr(info, "vmem_capacity_bytes", vmem)) or vmem
    except Exception:
        pass
    if vmem >= 96 * 1024 * 1024:
        # v5e / v6e: 128 MiB physical VMEM -> larger tiles, fewer grid steps.
        return 20 * 1024 * 1024, 96 * 1024 * 1024, False
    # v7x: 64 MiB per TensorCore -> keep double-buffered x tiles small.
    return 8 * 1024 * 1024, 48 * 1024 * 1024, True


def _choose_tiles(B_p, S_p, H_p, itemsize, x_tile_budget, two_core_hint):
    tb = 8  # B_p is padded to a multiple of 8 by the wrapper.

    # Hidden tile: multiple of 128 dividing H_p (or full H_p when unaligned),
    # sized so a (tb, 128, th) x tile still fits the per-buffer budget.
    if H_p % 128 == 0:
        th, d = 128, 128
        while d <= H_p:
            if H_p % d == 0 and tb * 128 * d * itemsize <= x_tile_budget:
                th = d
            d += 128
    else:
        th = H_p  # full-extent block is always layout-legal

    # Sequence tile: largest multiple of 128 dividing S_p with the x tile in budget.
    ts, d = 128, 128
    while d <= S_p:
        if S_p % d == 0 and tb * d * th * itemsize <= x_tile_budget:
            ts = d
        d += 128

    # v7x megacore: make the parallel grid extent at least 2 when possible so
    # both TensorCores get work (irrelevant on single-TC v5e/v6e).
    if two_core_hint and (B_p // tb) * (H_p // th) == 1 and th % 256 == 0:
        th //= 2

    return tb, th, ts


# --------------------------------------------------------------------------- #
# Wrapper
# --------------------------------------------------------------------------- #
def mean_masked_pooling(x, pad_mask, *, tb=None, th=None, ts=None):
    """x: (B, S, H) float array; pad_mask: (B, S) bool/int array (1 = keep)."""
    B, S, H = x.shape
    out_dtype = x.dtype
    itemsize = jnp.dtype(x.dtype).itemsize

    x_tile_budget, vmem_limit, two_core_hint = _vmem_budgets()

    # Exact per-row lengths, hoisted out of the kernel; exact f32 reciprocal.
    lengths = jnp.sum(pad_mask.astype(jnp.float32), axis=1)              # (B,)
    inv_len = (1.0 / jnp.maximum(lengths, 1.0)).astype(jnp.float32)      # (B,)

    # Pad to layout-friendly sizes.  All pads carry mask == 0, so they add
    # nothing to the masked sum; padded batch rows / hidden columns are sliced
    # off at the end.
    B_p = max(_round_up(B, 8), 8)
    S_p = _round_up(S, 128)
    H_p = H
    if H % 128 != 0 and 8 * 128 * H * itemsize > x_tile_budget:
        H_p = _round_up(H, 128)  # keep full-H blocks inside the VMEM budget

    mask = pad_mask.astype(x.dtype)                                      # (B, S)
    if (B_p, S_p, H_p) != (B, S, H):
        x = jnp.pad(x, ((0, B_p - B), (0, S_p - S), (0, H_p - H)))
        mask = jnp.pad(mask, ((0, B_p - B), (0, S_p - S)))
        inv_len = jnp.pad(inv_len, ((0, B_p - B),), constant_values=1.0)

    # Mask in x's dtype, shaped (B, 1, S): contraction dim lands in the
    # MXU-friendly position, no in-kernel widening or relayout.
    mask3 = mask.reshape(B_p, 1, S_p)
    inv_len2 = inv_len.reshape(B_p, 1)

    a_tb, a_th, a_ts = _choose_tiles(
        B_p, S_p, H_p, itemsize, x_tile_budget, two_core_hint)
    tb = a_tb if tb is None else tb
    th = a_th if th is None else th
    ts = a_ts if ts is None else ts
    assert B_p % tb == 0 and H_p % th == 0 and S_p % ts == 0, \
        "tiles must divide the (padded) B, H, S exactly"

    grid = (B_p // tb, H_p // th, S_p // ts)
    out = pl.pallas_call(
        _mean_masked_pooling_kernel,
        out_shape=jax.ShapeDtypeStruct((B_p, H_p), out_dtype),
        grid_spec=pltpu.PrefetchScalarGridSpec(
            num_scalar_prefetch=0,
            grid=grid,
            in_specs=[
                pl.BlockSpec((tb, ts, th), lambda b, h, s: (b, s, h)),   # x
                pl.BlockSpec((tb, 1, ts), lambda b, h, s: (b, 0, s)),    # mask
                pl.BlockSpec((tb, 1), lambda b, h, s: (b, 0)),           # 1/len
            ],
            out_specs=pl.BlockSpec((tb, th), lambda b, h, s: (b, h)),
            scratch_shapes=[
                pltpu.VMEM((tb, th), jnp.float32),   # masked-sum accumulator
            ],
        ),
        compiler_params=pltpu.CompilerParams(
            dimension_semantics=("parallel", "parallel", "arbitrary"),
            vmem_limit_bytes=vmem_limit,
        ),
    )(x, mask3, inv_len2)

    if (B_p, H_p) != (B, H):
        out = out[:B, :H]
    return out


# --------------------------------------------------------------------------- #
# Pure-JAX reference mirroring the PyTorch forward exactly
# --------------------------------------------------------------------------- #
def _reference(x, pad_mask):
    S = x.shape[1]
    lengths = pad_mask.sum(1).astype(jnp.float32)                        # (B,)
    xm = jnp.where(pad_mask[:, :, None], x, 0.0)                         # (B,S,H)
    scaling = jnp.where(lengths == 0, 1.0, S / jnp.maximum(lengths, 1.0))
    return xm.mean(1) * scaling[:, None]


if __name__ == "__main__":
    key = jax.random.PRNGKey(0)
    kx, k2 = jax.random.split(key)

    # Small shape matching the module's (batch, seq, hidden) convention.
    B, S, H = 2, 8, 32
    x = jax.random.normal(kx, (B, S, H), dtype=jnp.float32)
    valid_lengths = jnp.array([5, 3], dtype=jnp.int32)
    pad_mask = jnp.arange(S)[None, :] < valid_lengths[:, None]           # (B,S) bool

    out = jax.block_until_ready(mean_masked_pooling(x, pad_mask))
    ref = _reference(x, pad_mask)
    assert out.shape == (B, H)
    assert jnp.allclose(out, ref, rtol=1e-4, atol=1e-5), "small-shape mismatch"

    # Larger shape exercising the (batch, hidden, seq) grid + accumulator path,
    # including a fully-padded row (lengths == 0).
    B2, S2, H2 = 16, 256, 128
    x2 = jax.random.normal(k2, (B2, S2, H2), dtype=jnp.float32)
    lens2 = (jnp.arange(B2, dtype=jnp.int32) * 17) % (S2 + 1)            # includes 0
    pad_mask2 = jnp.arange(S2)[None, :] < lens2[:, None]
    out2 = jax.block_until_ready(mean_masked_pooling(x2, pad_mask2))
    ref2 = _reference(x2, pad_mask2)
    assert out2.shape == (B2, H2)
    assert jnp.allclose(out2, ref2, rtol=1e-4, atol=1e-5), "tiled-shape mismatch"

    print("KERNEL_OK")
</pallas_src>

<mosaic_0001>
module attributes {stable_mosaic.version = 11 : i64} {
  func.func @_mean_masked_pooling_kernel(%arg0: i32, %arg1: i32, %arg2: i32, %arg3: memref<8x128x32xf32, #tpu.memory_space<vmem>>, %arg4: memref<8x1x128xf32, #tpu.memory_space<vmem>>, %arg5: memref<8x1xf32, #tpu.memory_space<vmem>>, %arg6: memref<8x32xf32, #tpu.memory_space<vmem>>, %arg7: memref<8x32xf32, #tpu.memory_space<vmem>>) attributes {dimension_semantics = [#tpu.dimension_semantics<parallel>, #tpu.dimension_semantics<parallel>, #tpu.dimension_semantics<arbitrary>], iteration_bounds = array<i64: 1, 1, 1>, scalar_prefetch = 0 : i64, scratch_operands = 1 : i64, tpu.core_type = #tpu.core_type<tc>, window_params = [{transform_indices = @transform_0, window_bounds = array<i64: 8, 128, 32>}, {transform_indices = @transform_1, window_bounds = array<i64: 8, 1, 128>}, {transform_indices = @transform_2, window_bounds = array<i64: 8, 1>}, {transform_indices = @transform_3, window_bounds = array<i64: 8, 32>}]} {
    %c0_i32 = arith.constant 0 : i32
    %0 = arith.cmpi eq, %arg2, %c0_i32 : i32
    %1 = arith.extui %0 : i1 to i32
    %c0_i32_0 = arith.constant 0 : i32
    %2 = arith.cmpi ne, %1, %c0_i32_0 : i32
    scf.if %2 {
      %cst_12 = arith.constant 0.000000e+00 : f32
      %13 = vector.broadcast %cst_12 : f32 to vector<8x32xf32>
      %c0_13 = arith.constant 0 : index
      %c0_14 = arith.constant 0 : index
      %14 = vector.load %arg7[%c0_13, %c0_14] : memref<8x32xf32, #tpu.memory_space<vmem>>, vector<8x32xf32>
      tpu.vector_store %arg7[%c0_13, %c0_14], %13 {strides = array<i32>} : memref<8x32xf32, #tpu.memory_space<vmem>>, vector<8x32xf32>,
    } else {
    }
    %c0 = arith.constant 0 : index
    %c0_1 = arith.constant 0 : index
    %c0_2 = arith.constant 0 : index
    %3 = vector.load %arg4[%c0, %c0_1, %c0_2] : memref<8x1x128xf32, #tpu.memory_space<vmem>>, vector<8x1x128xf32>
    %c0_3 = arith.constant 0 : index
    %c0_4 = arith.constant 0 : index
    %c0_5 = arith.constant 0 : index
    %4 = vector.load %arg3[%c0_3, %c0_4, %c0_5] : memref<8x128x32xf32, #tpu.memory_space<vmem>>, vector<8x128x32xf32>
    "tpu.trace_start"() <{level = 10 : i32, message = "bks,bsh->bkh"}> : () -> ()
    %cst = arith.constant dense<0.000000e+00> : vector<8x1x32xf32>
    %5 = tpu.matmul %3, %4, %cst {dimension_numbers = #tpu.dot_dimension_numbers<[2], [1], [1], [2], [0, 0, 0, 1, 1, 2], [0], [0]>} : vector<8x1x128xf32>, vector<8x128x32xf32>, vector<8x1x32xf32> -> vector<8x1x32xf32>
    "tpu.trace_stop"() : () -> ()
    %c0_6 = arith.constant 0 : index
    %c0_7 = arith.constant 0 : index
    %6 = vector.load %arg7[%c0_6, %c0_7] : memref<8x32xf32, #tpu.memory_space<vmem>>, vector<8x32xf32>
    %7 = vector.shape_cast %5 : vector<8x1x32xf32> to vector<8x32xf32>
    %8 = arith.addf %6, %7 : vector<8x32xf32>
    %c0_8 = arith.constant 0 : index
    %c0_9 = arith.constant 0 : index
    %9 = vector.load %arg7[%c0_8, %c0_9] : memref<8x32xf32, #tpu.memory_space<vmem>>, vector<8x32xf32>
    tpu.vector_store %arg7[%c0_8, %c0_9], %8 {strides = array<i32>} : memref<8x32xf32, #tpu.memory_space<vmem>>, vector<8x32xf32>,
    %c0_i32_10 = arith.constant 0 : i32
    %10 = arith.cmpi eq, %arg2, %c0_i32_10 : i32
    %11 = arith.extui %10 : i1 to i32
    %c0_i32_11 = arith.constant 0 : i32
    %12 = arith.cmpi ne, %11, %c0_i32_11 : i32
    scf.if %12 {
      %c0_12 = arith.constant 0 : index
      %c0_13 = arith.constant 0 : index
      %13 = vector.load %arg7[%c0_12, %c0_13] : memref<8x32xf32, #tpu.memory_space<vmem>>, vector<8x32xf32>
      %c0_14 = arith.constant 0 : index
      %c0_15 = arith.constant 0 : index
      %14 = vector.load %arg5[%c0_14, %c0_15] : memref<8x1xf32, #tpu.memory_space<vmem>>, vector<8x1xf32>
      %15 = vector.broadcast %14 : vector<8x1xf32> to vector<8x32xf32>
      %16 = arith.mulf %13, %15 : vector<8x32xf32>
      %c0_16 = arith.constant 0 : index
      %c0_17 = arith.constant 0 : index
      %17 = vector.load %arg6[%c0_16, %c0_17] : memref<8x32xf32, #tpu.memory_space<vmem>>, vector<8x32xf32>
      tpu.vector_store %arg6[%c0_16, %c0_17], %16 {strides = array<i32>} : memref<8x32xf32, #tpu.memory_space<vmem>>, vector<8x32xf32>,
    } else {
    }
    return
  }
  func.func @transform_0(%arg0: i32, %arg1: i32, %arg2: i32) -> (i32, i32, i32) {
    %c0_i32 = arith.constant 0 : i32
    return %arg0, %arg2, %arg1 : i32, i32, i32
  }
  func.func @transform_1(%arg0: i32, %arg1: i32, %arg2: i32) -> (i32, i32, i32) {
    %c0_i32 = arith.constant 0 : i32
    %c0_i32_0 = arith.constant 0 : i32
    return %arg0, %c0_i32, %arg2 : i32, i32, i32
  }
  func.func @transform_2(%arg0: i32, %arg1: i32, %arg2: i32) -> (i32, i32) {
    %c0_i32 = arith.constant 0 : i32
    %c0_i32_0 = arith.constant 0 : i32
    return %arg0, %c0_i32 : i32, i32
  }
  func.func @transform_3(%arg0: i32, %arg1: i32, %arg2: i32) -> (i32, i32) {
    %c0_i32 = arith.constant 0 : i32
    return %arg0, %arg1 : i32, i32
  }
}

</mosaic_0001>

<llo_original>
// kernel: tpu_custom_call.1
$region0: #{tpu_custom_call.1}
  #allocation0 [shape = 'u32[]', space=smem, size = 0x4, offset = 0x4, fixed_abs, tag = 'smem constant byte address 0x4 - core index']
  #allocation1 [shape = 'u32[144,128]{1,0:T(1,128)}', space=vmem, size = 0x12000, scoped, tag = 'internal scratch']
  #allocation2 [shape = 'f32[8,32]{1,0:T(8,128)}', space=vmem, size = 0x1000, scoped, tag = 'scratch operand']
  %s0 = inlined_call_operand.vmem [shape: f32[8,128,32], index: 0, kind: input, shape index: {}]
  %s1 = inlined_call_operand.vmem [shape: f32[8,1,128], index: 1, kind: input, shape index: {}]
  %s2 = inlined_call_operand.vmem [shape: f32[8,1], index: 2, kind: input, shape index: {}]
  %s3 = inlined_call_operand.hbm [shape: f32[8,32], index: 3, kind: output, shape index: {}]
  %s4 = sld [smem:[#allocation0]]
  $region30: #{tpu_custom_call.1} parent=0
    _
  %s6 = ssub.s32 1, %s4
  %s7 = scalar_select 0, %s6, %s4
  $region1: #{tpu_custom_call.1} parent=0
    #allocation3 [shape = 'u8[4096]{0}', space=vmem, size = 0x1000, scoped, tag = 'output window, operand 0, single buffered']
    #allocation4 [shape = 's32[1]{0}', space=sflag, size = 0x4, scoped, tag = 'scoped memory for tpu_custom_call.1']
    %8 = vsyncpa [#allocation4], 0
    // Predicated region
    $region2: #{tpu_custom_call.1} parent=1 // pred_check
      _
    $region3: #{tpu_custom_call.1} parent=1 // pred_check_branch
      %10 = sbr.rel (0) target = $region5
    $region4: #{tpu_custom_call.1} parent=1 // pred_region
      _
    $region5: #{tpu_custom_call.1} parent=1 // pred_fallthru
      _
    // Predicated region
    $region6: #{tpu_custom_call.1} parent=1 // pred_check
      _
    $region7: #{tpu_custom_call.1} parent=1 // pred_check_branch
      %12 = sbr.rel (0) target = $region9
    $region8: #{tpu_custom_call.1} parent=1 // pred_region
      _
    $region9: #{tpu_custom_call.1} parent=1 // pred_fallthru
      _
    // Predicated region
    $region10: #{tpu_custom_call.1} parent=1 // pred_check
      _
    $region11: #{tpu_custom_call.1} parent=1 // pred_check_branch
      %14 = sbr.rel (0) target = $region13
    $region12: #{tpu_custom_call.1} parent=1 // pred_region
      _
    $region13: #{tpu_custom_call.1} parent=1 // pred_fallthru
      _
    %p15 = scmp.eq.s32.totalorder 0, 0
    // Predicated region
    $region14: #{tpu_custom_call.1} parent=1 // pred_check
      %p16 = pneg %p15
    $region15: #{tpu_custom_call.1} parent=1 // pred_check_branch
      %18 = sbr.rel (%p16) target = $region17
    $region16: #{tpu_custom_call.1} parent=1 // pred_region
      %vm19 = vcmask 261120
      %20 = vst.msk [vmem:[#allocation2] sm:$0xff] %vm19, 0.0
    $region17: #{tpu_custom_call.1} parent=1 // pred_fallthru
      _
    %v21 = vld [vmem:[%s1] sm:$0x1]
    %v22 = vld [vmem:[%s1 + $0x1] sm:$0x1]
    %v23 = vld [vmem:[%s1 + $0x2] sm:$0x1]
    %v24 = vld [vmem:[%s1 + $0x3] sm:$0x1]
    %v25 = vld [vmem:[%s1 + $0x4] sm:$0x1]
    %v26 = vld [vmem:[%s1 + $0x5] sm:$0x1]
    %v27 = vld [vmem:[%s1 + $0x6] sm:$0x1]
    %v28 = vld [vmem:[%s1 + $0x7] sm:$0x1]
    %v29 = vld [vmem:[%s0] sm:$0xff]
    %v30 = vld [vmem:[%s0 + $0x8] sm:$0xff]
    %v31 = vld [vmem:[%s0 + $0x10] sm:$0xff]
    %v32 = vld [vmem:[%s0 + $0x18] sm:$0xff]
    %v33 = vld [vmem:[%s0 + $0x20] sm:$0xff]
    %v34 = vld [vmem:[%s0 + $0x28] sm:$0xff]
    %v35 = vld [vmem:[%s0 + $0x30] sm:$0xff]
    %v36 = vld [vmem:[%s0 + $0x38] sm:$0xff]
    %v37 = vld [vmem:[%s0 + $0x40] sm:$0xff]
    %v38 = vld [vmem:[%s0 + $0x48] sm:$0xff]
    %v39 = vld [vmem:[%s0 + $0x50] sm:$0xff]
    %v40 = vld [vmem:[%s0 + $0x58] sm:$0xff]
    %v41 = vld [vmem:[%s0 + $0x60] sm:$0xff]
    %v42 = vld [vmem:[%s0 + $0x68] sm:$0xff]
    %v43 = vld [vmem:[%s0 + $0x70] sm:$0xff]
    %v44 = vld [vmem:[%s0 + $0x78] sm:$0xff]
    %v45 = vld [vmem:[%s0 + $0x80] sm:$0xff]
    %v46 = vld [vmem:[%s0 + $0x88] sm:$0xff]
    %v47 = vld [vmem:[%s0 + $0x90] sm:$0xff]
    %v48 = vld [vmem:[%s0 + $0x98] sm:$0xff]
    %v49 = vld [vmem:[%s0 + $0xa0] sm:$0xff]
    %v50 = vld [vmem:[%s0 + $0xa8] sm:$0xff]
    %v51 = vld [vmem:[%s0 + $0xb0] sm:$0xff]
    %v52 = vld [vmem:[%s0 + $0xb8] sm:$0xff]
    %v53 = vld [vmem:[%s0 + $0xc0] sm:$0xff]
    %v54 = vld [vmem:[%s0 + $0xc8] sm:$0xff]
    %v55 = vld [vmem:[%s0 + $0xd0] sm:$0xff]
    %v56 = vld [vmem:[%s0 + $0xd8] sm:$0xff]
    %v57 = vld [vmem:[%s0 + $0xe0] sm:$0xff]
    %v58 = vld [vmem:[%s0 + $0xe8] sm:$0xff]
    %v59 = vld [vmem:[%s0 + $0xf0] sm:$0xff]
    %v60 = vld [vmem:[%s0 + $0xf8] sm:$0xff]
    %v61 = vld [vmem:[%s0 + $0x100] sm:$0xff]
    %v62 = vld [vmem:[%s0 + $0x108] sm:$0xff]
    %v63 = vld [vmem:[%s0 + $0x110] sm:$0xff]
    %v64 = vld [vmem:[%s0 + $0x118] sm:$0xff]
    %v65 = vld [vmem:[%s0 + $0x120] sm:$0xff]
    %v66 = vld [vmem:[%s0 + $0x128] sm:$0xff]
    %v67 = vld [vmem:[%s0 + $0x130] sm:$0xff]
    %v68 = vld [vmem:[%s0 + $0x138] sm:$0xff]
    %v69 = vld [vmem:[%s0 + $0x140] sm:$0xff]
    %v70 = vld [vmem:[%s0 + $0x148] sm:$0xff]
    %v71 = vld [vmem:[%s0 + $0x150] sm:$0xff]
    %v72 = vld [vmem:[%s0 + $0x158] sm:$0xff]
    %v73 = vld [vmem:[%s0 + $0x160] sm:$0xff]
    %v74 = vld [vmem:[%s0 + $0x168] sm:$0xff]
    %v75 = vld [vmem:[%s0 + $0x170] sm:$0xff]
    %v76 = vld [vmem:[%s0 + $0x178] sm:$0xff]
    %v77 = vld [vmem:[%s0 + $0x180] sm:$0xff]
    %v78 = vld [vmem:[%s0 + $0x188] sm:$0xff]
    %v79 = vld [vmem:[%s0 + $0x190] sm:$0xff]
    %v80 = vld [vmem:[%s0 + $0x198] sm:$0xff]
    %v81 = vld [vmem:[%s0 + $0x1a0] sm:$0xff]
    %v82 = vld [vmem:[%s0 + $0x1a8] sm:$0xff]
    %v83 = vld [vmem:[%s0 + $0x1b0] sm:$0xff]
    %v84 = vld [vmem:[%s0 + $0x1b8] sm:$0xff]
    %v85 = vld [vmem:[%s0 + $0x1c0] sm:$0xff]
    %v86 = vld [vmem:[%s0 + $0x1c8] sm:$0xff]
    %v87 = vld [vmem:[%s0 + $0x1d0] sm:$0xff]
    %v88 = vld [vmem:[%s0 + $0x1d8] sm:$0xff]
    %v89 = vld [vmem:[%s0 + $0x1e0] sm:$0xff]
    %v90 = vld [vmem:[%s0 + $0x1e8] sm:$0xff]
    %v91 = vld [vmem:[%s0 + $0x1f0] sm:$0xff]
    %v92 = vld [vmem:[%s0 + $0x1f8] sm:$0xff]
    %v93 = vld [vmem:[%s0 + $0x200] sm:$0xff]
    %v94 = vld [vmem:[%s0 + $0x208] sm:$0xff]
    %v95 = vld [vmem:[%s0 + $0x210] sm:$0xff]
    %v96 = vld [vmem:[%s0 + $0x218] sm:$0xff]
    %v97 = vld [vmem:[%s0 + $0x220] sm:$0xff]
    %v98 = vld [vmem:[%s0 + $0x228] sm:$0xff]
    %v99 = vld [vmem:[%s0 + $0x230] sm:$0xff]
    %v100 = vld [vmem:[%s0 + $0x238] sm:$0xff]
    %v101 = vld [vmem:[%s0 + $0x240] sm:$0xff]
    %v102 = vld [vmem:[%s0 + $0x248] sm:$0xff]
    %v103 = vld [vmem:[%s0 + $0x250] sm:$0xff]
    %v104 = vld [vmem:[%s0 + $0x258] sm:$0xff]
    %v105 = vld [vmem:[%s0 + $0x260] sm:$0xff]
    %v106 = vld [vmem:[%s0 + $0x268] sm:$0xff]
    %v107 = vld [vmem:[%s0 + $0x270] sm:$0xff]
    %v108 = vld [vmem:[%s0 + $0x278] sm:$0xff]
    %v109 = vld [vmem:[%s0 + $0x280] sm:$0xff]
    %v110 = vld [vmem:[%s0 + $0x288] sm:$0xff]
    %v111 = vld [vmem:[%s0 + $0x290] sm:$0xff]
    %v112 = vld [vmem:[%s0 + $0x298] sm:$0xff]
    %v113 = vld [vmem:[%s0 + $0x2a0] sm:$0xff]
    %v114 = vld [vmem:[%s0 + $0x2a8] sm:$0xff]
    %v115 = vld [vmem:[%s0 + $0x2b0] sm:$0xff]
    %v116 = vld [vmem:[%s0 + $0x2b8] sm:$0xff]
    %v117 = vld [vmem:[%s0 + $0x2c0] sm:$0xff]
    %v118 = vld [vmem:[%s0 + $0x2c8] sm:$0xff]
    %v119 = vld [vmem:[%s0 + $0x2d0] sm:$0xff]
    %v120 = vld [vmem:[%s0 + $0x2d8] sm:$0xff]
    %v121 = vld [vmem:[%s0 + $0x2e0] sm:$0xff]
    %v122 = vld [vmem:[%s0 + $0x2e8] sm:$0xff]
    %v123 = vld [vmem:[%s0 + $0x2f0] sm:$0xff]
    %v124 = vld [vmem:[%s0 + $0x2f8] sm:$0xff]
    %v125 = vld [vmem:[%s0 + $0x300] sm:$0xff]
    %v126 = vld [vmem:[%s0 + $0x308] sm:$0xff]
    %v127 = vld [vmem:[%s0 + $0x310] sm:$0xff]
    %v128 = vld [vmem:[%s0 + $0x318] sm:$0xff]
    %v129 = vld [vmem:[%s0 + $0x320] sm:$0xff]
    %v130 = vld [vmem:[%s0 + $0x328] sm:$0xff]
    %v131 = vld [vmem:[%s0 + $0x330] sm:$0xff]
    %v132 = vld [vmem:[%s0 + $0x338] sm:$0xff]
    %v133 = vld [vmem:[%s0 + $0x340] sm:$0xff]
    %v134 = vld [vmem:[%s0 + $0x348] sm:$0xff]
    %v135 = vld [vmem:[%s0 + $0x350] sm:$0xff]
    %v136 = vld [vmem:[%s0 + $0x358] sm:$0xff]
    %v137 = vld [vmem:[%s0 + $0x360] sm:$0xff]
    %v138 = vld [vmem:[%s0 + $0x368] sm:$0xff]
    %v139 = vld [vmem:[%s0 + $0x370] sm:$0xff]
    %v140 = vld [vmem:[%s0 + $0x378] sm:$0xff]
    %v141 = vld [vmem:[%s0 + $0x380] sm:$0xff]
    %v142 = vld [vmem:[%s0 + $0x388] sm:$0xff]
    %v143 = vld [vmem:[%s0 + $0x390] sm:$0xff]
    %v144 = vld [vmem:[%s0 + $0x398] sm:$0xff]
    %v145 = vld [vmem:[%s0 + $0x3a0] sm:$0xff]
    %v146 = vld [vmem:[%s0 + $0x3a8] sm:$0xff]
    %v147 = vld [vmem:[%s0 + $0x3b0] sm:$0xff]
    %v148 = vld [vmem:[%s0 + $0x3b8] sm:$0xff]
    %v149 = vld [vmem:[%s0 + $0x3c0] sm:$0xff]
    %v150 = vld [vmem:[%s0 + $0x3c8] sm:$0xff]
    %v151 = vld [vmem:[%s0 + $0x3d0] sm:$0xff]
    %v152 = vld [vmem:[%s0 + $0x3d8] sm:$0xff]
    %v153 = vld [vmem:[%s0 + $0x3e0] sm:$0xff]
    %v154 = vld [vmem:[%s0 + $0x3e8] sm:$0xff]
    %v155 = vld [vmem:[%s0 + $0x3f0] sm:$0xff]
    %v156 = vld [vmem:[%s0 + $0x3f8] sm:$0xff]
    %157 = vmatprep.subr.mxu0 0.0
    %158 = vmatpush1.msra.mxu0 %v29
    %159 = vmatprep.subr.mxu0 0.0
    %160 = vmatpush1.msra.mxu0 %v30
    %161 = vmatprep.subr.mxu0 0.0
    %162 = vmatpush1.msra.mxu0 %v31
    %163 = vmatprep.subr.mxu0 0.0
    %164 = vmatpush1.msra.mxu0 %v32
    %165 = vmatprep.subr.mxu0 0.0
    %166 = vmatpush1.msra.mxu0 %v33
    %167 = vmatprep.subr.mxu0 0.0
    %168 = vmatpush1.msra.mxu0 %v34
    %169 = vmatprep.subr.mxu0 0.0
    %170 = vmatpush1.msra.mxu0 %v35
    %171 = vmatprep.subr.mxu0 0.0
    %172 = vmatpush1.msra.mxu0 %v36
    %173 = vmatprep.subr.mxu0 0.0
    %174 = vmatpush1.msra.mxu0 %v37
    %175 = vmatprep.subr.mxu0 0.0
    %176 = vmatpush1.msra.mxu0 %v38
    %177 = vmatprep.subr.mxu0 0.0
    %178 = vmatpush1.msra.mxu0 %v39
    %179 = vmatprep.subr.mxu0 0.0
    %180 = vmatpush1.msra.mxu0 %v40
    %181 = vmatprep.subr.mxu0 0.0
    %182 = vmatpush1.msra.mxu0 %v41
    %183 = vmatprep.subr.mxu0 0.0
    %184 = vmatpush1.msra.mxu0 %v42
    %185 = vmatprep.subr.mxu0 0.0
    %186 = vmatpush1.msra.mxu0 %v43
    %187 = vmatprep.subr.mxu0 0.0
    %188 = vmatpush1.msra.mxu0 %v44
    %189 = vmatprep.subr.mxu0 0.0
    %190 = vmatpush1.msra.mxu0 0.0
    %191 = vmatprep.subr.mxu0 0.0
    %192 = vmatpush1.msra.mxu0 0.0
    %193 = vmatprep.subr.mxu0 0.0
    %194 = vmatpush1.msra.mxu0 0.0
    %195 = vmatprep.subr.mxu0 0.0
    %196 = vmatpush1.msra.mxu0 0.0
    %197 = vmatprep.subr.mxu0 0.0
    %198 = vmatpush1.msra.mxu0 0.0
    %199 = vmatprep.subr.mxu0 0.0
    %200 = vmatpush1.msra.mxu0 0.0
    %201 = vmatprep.subr.mxu0 0.0
    %202 = vmatpush1.msra.mxu0 0.0
    %203 = vmatprep.subr.mxu0 0.0
    %204 = vmatpush1.msra.mxu0 0.0
    %205 = vmatprep.subr.mxu0 0.0
    %206 = vmatpush1.msra.mxu0 0.0
    %207 = vmatprep.subr.mxu0 0.0
    %208 = vmatpush1.msra.mxu0 0.0
    %209 = vmatprep.subr.mxu0 0.0
    %210 = vmatpush1.msra.mxu0 0.0
    %211 = vmatprep.subr.mxu0 0.0
    %212 = vmatpush1.msra.mxu0 0.0
    %213 = vmatprep.subr.mxu0 0.0
    %214 = vmatpush1.msra.mxu0 0.0
    %215 = vmatprep.subr.mxu0 0.0
    %216 = vmatpush1.msra.mxu0 0.0
    %217 = vmatprep.subr.mxu0 0.0
    %218 = vmatpush1.msra.mxu0 0.0
    %219 = vmatprep.subr.mxu0 0.0
    %220 = vmatpush1.msra.mxu0 0.0
    %221 = vmatprep.mubr.f32.mxu0 0.0
    %222 = vmatmul.mubr.f32.gmra.mrb[0].mxu0 %v21
    %v223 = vpop.f32.mrb[0].mxu0
    %v224 = vadd.f32 0.0, %v223
    %v225 = vpop.f32.mrb[0].mxu0
    %226 = vdwg.mxu0
    %227 = vmatprep.subr.mxu0 0.0
    %228 = vmatpush1.msra.mxu0 %v45
    %229 = vmatprep.subr.mxu0 0.0
    %230 = vmatpush1.msra.mxu0 %v46
    %231 = vmatprep.subr.mxu0 0.0
    %232 = vmatpush1.msra.mxu0 %v47
    %233 = vmatprep.subr.mxu0 0.0
    %234 = vmatpush1.msra.mxu0 %v48
    %235 = vmatprep.subr.mxu0 0.0
    %236 = vmatpush1.msra.mxu0 %v49
    %237 = vmatprep.subr.mxu0 0.0
    %238 = vmatpush1.msra.mxu0 %v50
    %239 = vmatprep.subr.mxu0 0.0
    %240 = vmatpush1.msra.mxu0 %v51
    %241 = vmatprep.subr.mxu0 0.0
    %242 = vmatpush1.msra.mxu0 %v52
    %243 = vmatprep.subr.mxu0 0.0
    %244 = vmatpush1.msra.mxu0 %v53
    %245 = vmatprep.subr.mxu0 0.0
    %246 = vmatpush1.msra.mxu0 %v54
    %247 = vmatprep.subr.mxu0 0.0
    %248 = vmatpush1.msra.mxu0 %v55
    %249 = vmatprep.subr.mxu0 0.0
    %250 = vmatpush1.msra.mxu0 %v56
    %251 = vmatprep.subr.mxu0 0.0
    %252 = vmatpush1.msra.mxu0 %v57
    %253 = vmatprep.subr.mxu0 0.0
    %254 = vmatpush1.msra.mxu0 %v58
    %255 = vmatprep.subr.mxu0 0.0
    %256 = vmatpush1.msra.mxu0 %v59
    %257 = vmatprep.subr.mxu0 0.0
    %258 = vmatpush1.msra.mxu0 %v60
    %259 = vmatprep.subr.mxu0 0.0
    %260 = vmatpush1.msra.mxu0 0.0
    %261 = vmatprep.subr.mxu0 0.0
    %262 = vmatpush1.msra.mxu0 0.0
    %263 = vmatprep.subr.mxu0 0.0
    %264 = vmatpush1.msra.mxu0 0.0
    %265 = vmatprep.subr.mxu0 0.0
    %266 = vmatpush1.msra.mxu0 0.0
    %267 = vmatprep.subr.mxu0 0.0
    %268 = vmatpush1.msra.mxu0 0.0
    %269 = vmatprep.subr.mxu0 0.0
    %270 = vmatpush1.msra.mxu0 0.0
    %271 = vmatprep.subr.mxu0 0.0
    %272 = vmatpush1.msra.mxu0 0.0
    %273 = vmatprep.subr.mxu0 0.0
    %274 = vmatpush1.msra.mxu0 0.0
    %275 = vmatprep.subr.mxu0 0.0
    %276 = vmatpush1.msra.mxu0 0.0
    %277 = vmatprep.subr.mxu0 0.0
    %278 = vmatpush1.msra.mxu0 0.0
    %279 = vmatprep.subr.mxu0 0.0
    %280 = vmatpush1.msra.mxu0 0.0
    %281 = vmatprep.subr.mxu0 0.0
    %282 = vmatpush1.msra.mxu0 0.0
    %283 = vmatprep.subr.mxu0 0.0
    %284 = vmatpush1.msra.mxu0 0.0
    %285 = vmatprep.subr.mxu0 0.0
    %286 = vmatpush1.msra.mxu0 0.0
    %287 = vmatprep.subr.mxu0 0.0
    %288 = vmatpush1.msra.mxu0 0.0
    %289 = vmatprep.subr.mxu0 0.0
    %290 = vmatpush1.msra.mxu0 0.0
    %291 = vmatprep.mubr.f32.mxu0 0.0
    %292 = vmatmul.mubr.f32.gmra.mrb[0].mxu0 %v22
    %v293 = vpop.f32.mrb[0].mxu0
    %v294 = vadd.f32 0.0, %v293
    %v295 = vpop.f32.mrb[0].mxu0
    %296 = vdwg.mxu0
    %297 = vmatprep.subr.mxu0 0.0
    %298 = vmatpush1.msra.mxu0 %v61
    %299 = vmatprep.subr.mxu0 0.0
    %300 = vmatpush1.msra.mxu0 %v62
    %301 = vmatprep.subr.mxu0 0.0
    %302 = vmatpush1.msra.mxu0 %v63
    %303 = vmatprep.subr.mxu0 0.0
    %304 = vmatpush1.msra.mxu0 %v64
    %305 = vmatprep.subr.mxu0 0.0
    %306 = vmatpush1.msra.mxu0 %v65
    %307 = vmatprep.subr.mxu0 0.0
    %308 = vmatpush1.msra.mxu0 %v66
    %309 = vmatprep.subr.mxu0 0.0
    %310 = vmatpush1.msra.mxu0 %v67
    %311 = vmatprep.subr.mxu0 0.0
    %312 = vmatpush1.msra.mxu0 %v68
    %313 = vmatprep.subr.mxu0 0.0
    %314 = vmatpush1.msra.mxu0 %v69
    %315 = vmatprep.subr.mxu0 0.0
    %316 = vmatpush1.msra.mxu0 %v70
    %317 = vmatprep.subr.mxu0 0.0
    %318 = vmatpush1.msra.mxu0 %v71
    %319 = vmatprep.subr.mxu0 0.0
    %320 = vmatpush1.msra.mxu0 %v72
    %321 = vmatprep.subr.mxu0 0.0
    %322 = vmatpush1.msra.mxu0 %v73
    %323 = vmatprep.subr.mxu0 0.0
    %324 = vmatpush1.msra.mxu0 %v74
    %325 = vmatprep.subr.mxu0 0.0
    %326 = vmatpush1.msra.mxu0 %v75
    %327 = vmatprep.subr.mxu0 0.0
    %328 = vmatpush1.msra.mxu0 %v76
    %329 = vmatprep.subr.mxu0 0.0
    %330 = vmatpush1.msra.mxu0 0.0
    %331 = vmatprep.subr.mxu0 0.0
    %332 = vmatpush1.msra.mxu0 0.0
    %333 = vmatprep.subr.mxu0 0.0
    %334 = vmatpush1.msra.mxu0 0.0
    %335 = vmatprep.subr.mxu0 0.0
    %336 = vmatpush1.msra.mxu0 0.0
    %337 = vmatprep.subr.mxu0 0.0
    %338 = vmatpush1.msra.mxu0 0.0
    %339 = vmatprep.subr.mxu0 0.0
    %340 = vmatpush1.msra.mxu0 0.0
    %341 = vmatprep.subr.mxu0 0.0
    %342 = vmatpush1.msra.mxu0 0.0
    %343 = vmatprep.subr.mxu0 0.0
    %344 = vmatpush1.msra.mxu0 0.0
    %345 = vmatprep.subr.mxu0 0.0
    %346 = vmatpush1.msra.mxu0 0.0
    %347 = vmatprep.subr.mxu0 0.0
    %348 = vmatpush1.msra.mxu0 0.0
    %349 = vmatprep.subr.mxu0 0.0
    %350 = vmatpush1.msra.mxu0 0.0
    %351 = vmatprep.subr.mxu0 0.0
    %352 = vmatpush1.msra.mxu0 0.0
    %353 = vmatprep.subr.mxu0 0.0
    %354 = vmatpush1.msra.mxu0 0.0
    %355 = vmatprep.subr.mxu0 0.0
    %356 = vmatpush1.msra.mxu0 0.0
    %357 = vmatprep.subr.mxu0 0.0
    %358 = vmatpush1.msra.mxu0 0.0
    %359 = vmatprep.subr.mxu0 0.0
    %360 = vmatpush1.msra.mxu0 0.0
    %361 = vmatprep.mubr.f32.mxu0 0.0
    %362 = vmatmul.mubr.f32.gmra.mrb[0].mxu0 %v23
    %v363 = vpop.f32.mrb[0].mxu0
    %v364 = vadd.f32 0.0, %v363
    %v365 = vpop.f32.mrb[0].mxu0
    %366 = vdwg.mxu0
    %367 = vmatprep.subr.mxu0 0.0
    %368 = vmatpush1.msra.mxu0 %v77
    %369 = vmatprep.subr.mxu0 0.0
    %370 = vmatpush1.msra.mxu0 %v78
    %371 = vmatprep.subr.mxu0 0.0
    %372 = vmatpush1.msra.mxu0 %v79
    %373 = vmatprep.subr.mxu0 0.0
    %374 = vmatpush1.msra.mxu0 %v80
    %375 = vmatprep.subr.mxu0 0.0
    %376 = vmatpush1.msra.mxu0 %v81
    %377 = vmatprep.subr.mxu0 0.0
    %378 = vmatpush1.msra.mxu0 %v82
    %379 = vmatprep.subr.mxu0 0.0
    %380 = vmatpush1.msra.mxu0 %v83
    %381 = vmatprep.subr.mxu0 0.0
    %382 = vmatpush1.msra.mxu0 %v84
    %383 = vmatprep.subr.mxu0 0.0
    %384 = vmatpush1.msra.mxu0 %v85
    %385 = vmatprep.subr.mxu0 0.0
    %386 = vmatpush1.msra.mxu0 %v86
    %387 = vmatprep.subr.mxu0 0.0
    %388 = vmatpush1.msra.mxu0 %v87
    %389 = vmatprep.subr.mxu0 0.0
    %390 = vmatpush1.msra.mxu0 %v88
    %391 = vmatprep.subr.mxu0 0.0
    %392 = vmatpush1.msra.mxu0 %v89
    %393 = vmatprep.subr.mxu0 0.0
    %394 = vmatpush1.msra.mxu0 %v90
    %395 = vmatprep.subr.mxu0 0.0
    %396 = vmatpush1.msra.mxu0 %v91
    %397 = vmatprep.subr.mxu0 0.0
    %398 = vmatpush1.msra.mxu0 %v92
    %399 = vmatprep.subr.mxu0 0.0
    %400 = vmatpush1.msra.mxu0 0.0
    %401 = vmatprep.subr.mxu0 0.0
    %402 = vmatpush1.msra.mxu0 0.0
    %403 = vmatprep.subr.mxu0 0.0
    %404 = vmatpush1.msra.mxu0 0.0
    %405 = vmatprep.subr.mxu0 0.0
    %406 = vmatpush1.msra.mxu0 0.0
    %407 = vmatprep.subr.mxu0 0.0
    %408 = vmatpush1.msra.mxu0 0.0
    %409 = vmatprep.subr.mxu0 0.0
    %410 = vmatpush1.msra.mxu0 0.0
    %411 = vmatprep.subr.mxu0 0.0
    %412 = vmatpush1.msra.mxu0 0.0
    %413 = vmatprep.subr.mxu0 0.0
    %414 = vmatpush1.msra.mxu0 0.0
    %415 = vmatprep.subr.mxu0 0.0
    %416 = vmatpush1.msra.mxu0 0.0
    %417 = vmatprep.subr.mxu0 0.0
    %418 = vmatpush1.msra.mxu0 0.0
    %419 = vmatprep.subr.mxu0 0.0
    %420 = vmatpush1.msra.mxu0 0.0
    %421 = vmatprep.subr.mxu0 0.0
    %422 = vmatpush1.msra.mxu0 0.0
    %423 = vmatprep.subr.mxu0 0.0
    %424 = vmatpush1.msra.mxu0 0.0
    %425 = vmatprep.subr.mxu0 0.0
    %426 = vmatpush1.msra.mxu0 0.0
    %427 = vmatprep.subr.mxu0 0.0
    %428 = vmatpush1.msra.mxu0 0.0
    %429 = vmatprep.subr.mxu0 0.0
    %430 = vmatpush1.msra.mxu0 0.0
    %431 = vmatprep.mubr.f32.mxu0 0.0
    %432 = vmatmul.mubr.f32.gmra.mrb[0].mxu0 %v24
    %v433 = vpop.f32.mrb[0].mxu0
    %v434 = vadd.f32 0.0, %v433
    %v435 = vpop.f32.mrb[0].mxu0
    %436 = vdwg.mxu0
    %437 = vmatprep.subr.mxu0 0.0
    %438 = vmatpush1.msra.mxu0 %v93
    %439 = vmatprep.subr.mxu0 0.0
    %440 = vmatpush1.msra.mxu0 %v94
    %441 = vmatprep.subr.mxu0 0.0
    %442 = vmatpush1.msra.mxu0 %v95
    %443 = vmatprep.subr.mxu0 0.0
    %444 = vmatpush1.msra.mxu0 %v96
    %445 = vmatprep.subr.mxu0 0.0
    %446 = vmatpush1.msra.mxu0 %v97
    %447 = vmatprep.subr.mxu0 0.0
    %448 = vmatpush1.msra.mxu0 %v98
    %449 = vmatprep.subr.mxu0 0.0
    %450 = vmatpush1.msra.mxu0 %v99
    %451 = vmatprep.subr.mxu0 0.0
    %452 = vmatpush1.msra.mxu0 %v100
    %453 = vmatprep.subr.mxu0 0.0
    %454 = vmatpush1.msra.mxu0 %v101
    %455 = vmatprep.subr.mxu0 0.0
    %456 = vmatpush1.msra.mxu0 %v102
    %457 = vmatprep.subr.mxu0 0.0
    %458 = vmatpush1.msra.mxu0 %v103
    %459 = vmatprep.subr.mxu0 0.0
    %460 = vmatpush1.msra.mxu0 %v104
    %461 = vmatprep.subr.mxu0 0.0
    %462 = vmatpush1.msra.mxu0 %v105
    %463 = vmatprep.subr.mxu0 0.0
    %464 = vmatpush1.msra.mxu0 %v106
    %465 = vmatprep.subr.mxu0 0.0
    %466 = vmatpush1.msra.mxu0 %v107
    %467 = vmatprep.subr.mxu0 0.0
    %468 = vmatpush1.msra.mxu0 %v108
    %469 = vmatprep.subr.mxu0 0.0
    %470 = vmatpush1.msra.mxu0 0.0
    %471 = vmatprep.subr.mxu0 0.0
    %472 = vmatpush1.msra.mxu0 0.0
    %473 = vmatprep.subr.mxu0 0.0
    %474 = vmatpush1.msra.mxu0 0.0
    %475 = vmatprep.subr.mxu0 0.0
    %476 = vmatpush1.msra.mxu0 0.0
    %477 = vmatprep.subr.mxu0 0.0
    %478 = vmatpush1.msra.mxu0 0.0
    %479 = vmatprep.subr.mxu0 0.0
    %480 = vmatpush1.msra.mxu0 0.0
    %481 = vmatprep.subr.mxu0 0.0
    %482 = vmatpush1.msra.mxu0 0.0
    %483 = vmatprep.subr.mxu0 0.0
    %484 = vmatpush1.msra.mxu0 0.0
    %485 = vmatprep.subr.mxu0 0.0
    %486 = vmatpush1.msra.mxu0 0.0
    %487 = vmatprep.subr.mxu0 0.0
    %488 = vmatpush1.msra.mxu0 0.0
    %489 = vmatprep.subr.mxu0 0.0
    %490 = vmatpush1.msra.mxu0 0.0
    %491 = vmatprep.subr.mxu0 0.0
    %492 = vmatpush1.msra.mxu0 0.0
    %493 = vmatprep.subr.mxu0 0.0
    %494 = vmatpush1.msra.mxu0 0.0
    %495 = vmatprep.subr.mxu0 0.0
    %496 = vmatpush1.msra.mxu0 0.0
    %497 = vmatprep.subr.mxu0 0.0
    %498 = vmatpush1.msra.mxu0 0.0
    %499 = vmatprep.subr.mxu0 0.0
    %500 = vmatpush1.msra.mxu0 0.0
    %501 = vmatprep.mubr.f32.mxu0 0.0
    %502 = vmatmul.mubr.f32.gmra.mrb[0].mxu0 %v25
    %v503 = vpop.f32.mrb[0].mxu0
    %v504 = vadd.f32 0.0, %v503
    %v505 = vpop.f32.mrb[0].mxu0
    %506 = vdwg.mxu0
    %507 = vmatprep.subr.mxu0 0.0
    %508 = vmatpush1.msra.mxu0 %v109
    %509 = vmatprep.subr.mxu0 0.0
    %510 = vmatpush1.msra.mxu0 %v110
    %511 = vmatprep.subr.mxu0 0.0
    %512 = vmatpush1.msra.mxu0 %v111
    %513 = vmatprep.subr.mxu0 0.0
    %514 = vmatpush1.msra.mxu0 %v112
    %515 = vmatprep.subr.mxu0 0.0
    %516 = vmatpush1.msra.mxu0 %v113
    %517 = vmatprep.subr.mxu0 0.0
    %518 = vmatpush1.msra.mxu0 %v114
    %519 = vmatprep.subr.mxu0 0.0
    %520 = vmatpush1.msra.mxu0 %v115
    %521 = vmatprep.subr.mxu0 0.0
    %522 = vmatpush1.msra.mxu0 %v116
    %523 = vmatprep.subr.mxu0 0.0
    %524 = vmatpush1.msra.mxu0 %v117
    %525 = vmatprep.subr.mxu0 0.0
    %526 = vmatpush1.msra.mxu0 %v118
    %527 = vmatprep.subr.mxu0 0.0
    %528 = vmatpush1.msra.mxu0 %v119
    %529 = vmatprep.subr.mxu0 0.0
    %530 = vmatpush1.msra.mxu0 %v120
    %531 = vmatprep.subr.mxu0 0.0
    %532 = vmatpush1.msra.mxu0 %v121
    %533 = vmatprep.subr.mxu0 0.0
    %534 = vmatpush1.msra.mxu0 %v122
    %535 = vmatprep.subr.mxu0 0.0
    %536 = vmatpush1.msra.mxu0 %v123
    %537 = vmatprep.subr.mxu0 0.0
    %538 = vmatpush1.msra.mxu0 %v124
    %539 = vmatprep.subr.mxu0 0.0
    %540 = vmatpush1.msra.mxu0 0.0
    %541 = vmatprep.subr.mxu0 0.0
    %542 = vmatpush1.msra.mxu0 0.0
    %543 = vmatprep.subr.mxu0 0.0
    %544 = vmatpush1.msra.mxu0 0.0
    %545 = vmatprep.subr.mxu0 0.0
    %546 = vmatpush1.msra.mxu0 0.0
    %547 = vmatprep.subr.mxu0 0.0
    %548 = vmatpush1.msra.mxu0 0.0
    %549 = vmatprep.subr.mxu0 0.0
    %550 = vmatpush1.msra.mxu0 0.0
    %551 = vmatprep.subr.mxu0 0.0
    %552 = vmatpush1.msra.mxu0 0.0
    %553 = vmatprep.subr.mxu0 0.0
    %554 = vmatpush1.msra.mxu0 0.0
    %555 = vmatprep.subr.mxu0 0.0
    %556 = vmatpush1.msra.mxu0 0.0
    %557 = vmatprep.subr.mxu0 0.0
    %558 = vmatpush1.msra.mxu0 0.0
    %559 = vmatprep.subr.mxu0 0.0
    %560 = vmatpush1.msra.mxu0 0.0
    %561 = vmatprep.subr.mxu0 0.0
    %562 = vmatpush1.msra.mxu0 0.0
    %563 = vmatprep.subr.mxu0 0.0
    %564 = vmatpush1.msra.mxu0 0.0
    %565 = vmatprep.subr.mxu0 0.0
    %566 = vmatpush1.msra.mxu0 0.0
    %567 = vmatprep.subr.mxu0 0.0
    %568 = vmatpush1.msra.mxu0 0.0
    %569 = vmatprep.subr.mxu0 0.0
    %570 = vmatpush1.msra.mxu0 0.0
    %571 = vmatprep.mubr.f32.mxu0 0.0
    %572 = vmatmul.mubr.f32.gmra.mrb[0].mxu0 %v26
    %v573 = vpop.f32.mrb[0].mxu0
    %v574 = vadd.f32 0.0, %v573
    %v575 = vpop.f32.mrb[0].mxu0
    %576 = vdwg.mxu0
    %577 = vmatprep.subr.mxu0 0.0
    %578 = vmatpush1.msra.mxu0 %v125
    %579 = vmatprep.subr.mxu0 0.0
    %580 = vmatpush1.msra.mxu0 %v126
    %581 = vmatprep.subr.mxu0 0.0
    %582 = vmatpush1.msra.mxu0 %v127
    %583 = vmatprep.subr.mxu0 0.0
    %584 = vmatpush1.msra.mxu0 %v128
    %585 = vmatprep.subr.mxu0 0.0
    %586 = vmatpush1.msra.mxu0 %v129
    %587 = vmatprep.subr.mxu0 0.0
    %588 = vmatpush1.msra.mxu0 %v130
    %589 = vmatprep.subr.mxu0 0.0
    %590 = vmatpush1.msra.mxu0 %v131
    %591 = vmatprep.subr.mxu0 0.0
    %592 = vmatpush1.msra.mxu0 %v132
    %593 = vmatprep.subr.mxu0 0.0
    %594 = vmatpush1.msra.mxu0 %v133
    %595 = vmatprep.subr.mxu0 0.0
    %596 = vmatpush1.msra.mxu0 %v134
    %597 = vmatprep.subr.mxu0 0.0
    %598 = vmatpush1.msra.mxu0 %v135
    %599 = vmatprep.subr.mxu0 0.0
    %600 = vmatpush1.msra.mxu0 %v136
    %601 = vmatprep.subr.mxu0 0.0
    %602 = vmatpush1.msra.mxu0 %v137
    %603 = vmatprep.subr.mxu0 0.0
    %604 = vmatpush1.msra.mxu0 %v138
    %605 = vmatprep.subr.mxu0 0.0
    %606 = vmatpush1.msra.mxu0 %v139
    %607 = vmatprep.subr.mxu0 0.0
    %608 = vmatpush1.msra.mxu0 %v140
    %609 = vmatprep.subr.mxu0 0.0
    %610 = vmatpush1.msra.mxu0 0.0
    %611 = vmatprep.subr.mxu0 0.0
    %612 = vmatpush1.msra.mxu0 0.0
    %613 = vmatprep.subr.mxu0 0.0
    %614 = vmatpush1.msra.mxu0 0.0
    %615 = vmatprep.subr.mxu0 0.0
    %616 = vmatpush1.msra.mxu0 0.0
    %617 = vmatprep.subr.mxu0 0.0
    %618 = vmatpush1.msra.mxu0 0.0
    %619 = vmatprep.subr.mxu0 0.0
    %620 = vmatpush1.msra.mxu0 0.0
    %621 = vmatprep.subr.mxu0 0.0
    %622 = vmatpush1.msra.mxu0 0.0
    %623 = vmatprep.subr.mxu0 0.0
    %624 = vmatpush1.msra.mxu0 0.0
    %625 = vmatprep.subr.mxu0 0.0
    %626 = vmatpush1.msra.mxu0 0.0
    %627 = vmatprep.subr.mxu0 0.0
    %628 = vmatpush1.msra.mxu0 0.0
    %629 = vmatprep.subr.mxu0 0.0
    %630 = vmatpush1.msra.mxu0 0.0
    %631 = vmatprep.subr.mxu0 0.0
    %632 = vmatpush1.msra.mxu0 0.0
    %633 = vmatprep.subr.mxu0 0.0
    %634 = vmatpush1.msra.mxu0 0.0
    %635 = vmatprep.subr.mxu0 0.0
    %636 = vmatpush1.msra.mxu0 0.0
    %637 = vmatprep.subr.mxu0 0.0
    %638 = vmatpush1.msra.mxu0 0.0
    %639 = vmatprep.subr.mxu0 0.0
    %640 = vmatpush1.msra.mxu0 0.0
    %641 = vmatprep.mubr.f32.mxu0 0.0
    %642 = vmatmul.mubr.f32.gmra.mrb[0].mxu0 %v27
    %v643 = vpop.f32.mrb[0].mxu0
    %v644 = vadd.f32 0.0, %v643
    %v645 = vpop.f32.mrb[0].mxu0
    %646 = vdwg.mxu0
    %647 = vmatprep.subr.mxu0 0.0
    %648 = vmatpush1.msra.mxu0 %v141
    %649 = vmatprep.subr.mxu0 0.0
    %650 = vmatpush1.msra.mxu0 %v142
    %651 = vmatprep.subr.mxu0 0.0
    %652 = vmatpush1.msra.mxu0 %v143
    %653 = vmatprep.subr.mxu0 0.0
    %654 = vmatpush1.msra.mxu0 %v144
    %655 = vmatprep.subr.mxu0 0.0
    %656 = vmatpush1.msra.mxu0 %v145
    %657 = vmatprep.subr.mxu0 0.0
    %658 = vmatpush1.msra.mxu0 %v146
    %659 = vmatprep.subr.mxu0 0.0
    %660 = vmatpush1.msra.mxu0 %v147
    %661 = vmatprep.subr.mxu0 0.0
    %662 = vmatpush1.msra.mxu0 %v148
    %663 = vmatprep.subr.mxu0 0.0
    %664 = vmatpush1.msra.mxu0 %v149
    %665 = vmatprep.subr.mxu0 0.0
    %666 = vmatpush1.msra.mxu0 %v150
    %667 = vmatprep.subr.mxu0 0.0
    %668 = vmatpush1.msra.mxu0 %v151
    %669 = vmatprep.subr.mxu0 0.0
    %670 = vmatpush1.msra.mxu0 %v152
    %671 = vmatprep.subr.mxu0 0.0
    %672 = vmatpush1.msra.mxu0 %v153
    %673 = vmatprep.subr.mxu0 0.0
    %674 = vmatpush1.msra.mxu0 %v154
    %675 = vmatprep.subr.mxu0 0.0
    %676 = vmatpush1.msra.mxu0 %v155
    %677 = vmatprep.subr.mxu0 0.0
    %678 = vmatpush1.msra.mxu0 %v156
    %679 = vmatprep.subr.mxu0 0.0
    %680 = vmatpush1.msra.mxu0 0.0
    %681 = vmatprep.subr.mxu0 0.0
    %682 = vmatpush1.msra.mxu0 0.0
    %683 = vmatprep.subr.mxu0 0.0
    %684 = vmatpush1.msra.mxu0 0.0
    %685 = vmatprep.subr.mxu0 0.0
    %686 = vmatpush1.msra.mxu0 0.0
    %687 = vmatprep.subr.mxu0 0.0
    %688 = vmatpush1.msra.mxu0 0.0
    %689 = vmatprep.subr.mxu0 0.0
    %690 = vmatpush1.msra.mxu0 0.0
    %691 = vmatprep.subr.mxu0 0.0
    %692 = vmatpush1.msra.mxu0 0.0
    %693 = vmatprep.subr.mxu0 0.0
    %694 = vmatpush1.msra.mxu0 0.0
    %695 = vmatprep.subr.mxu0 0.0
    %696 = vmatpush1.msra.mxu0 0.0
    %697 = vmatprep.subr.mxu0 0.0
    %698 = vmatpush1.msra.mxu0 0.0
    %699 = vmatprep.subr.mxu0 0.0
    %700 = vmatpush1.msra.mxu0 0.0
    %701 = vmatprep.subr.mxu0 0.0
    %702 = vmatpush1.msra.mxu0 0.0
    %703 = vmatprep.subr.mxu0 0.0
    %704 = vmatpush1.msra.mxu0 0.0
    %705 = vmatprep.subr.mxu0 0.0
    %706 = vmatpush1.msra.mxu0 0.0
    %707 = vmatprep.subr.mxu0 0.0
    %708 = vmatpush1.msra.mxu0 0.0
    %709 = vmatprep.subr.mxu0 0.0
    %710 = vmatpush1.msra.mxu0 0.0
    %711 = vmatprep.mubr.f32.mxu0 0.0
    %712 = vmatmul.mubr.f32.gmra.mrb[0].mxu0 %v28
    %v713 = vpop.f32.mrb[0].mxu0
    %v714 = vadd.f32 0.0, %v713
    %v715 = vpop.f32.mrb[0].mxu0
    %716 = vdwg.mxu0
    %v717 = vld [vmem:[#allocation2] sm:$0xff]
    %v726 = vrot.slane %v294, 7
    %vm727 = vcmask 1041409
    %v728 = vsel %vm727, %v726, %v224
    %v729 = vrot.slane %v364, 6
    %vm730 = vcmask 1042434
    %v731 = vsel %vm730, %v729, %v728
    %v732 = vrot.slane %v434, 5
    %vm733 = vcmask 1043459
    %v734 = vsel %vm733, %v732, %v731
    %v735 = vrot.slane %v504, 4
    %vm736 = vcmask 1044484
    %v737 = vsel %vm736, %v735, %v734
    %v738 = vrot.slane %v574, 3
    %vm739 = vcmask 1045509
    %v740 = vsel %vm739, %v738, %v737
    %v741 = vrot.slane %v644, 2
    %vm742 = vcmask 1046534
    %v743 = vsel %vm742, %v741, %v740
    %v744 = vrot.slane %v714, 1
    %vm745 = vcmask 1047559
    %v746 = vsel %vm745, %v744, %v743
    %v748 = vadd.f32 %v717, %v746
    %vm749 = vcmask 261120
    %750 = vst.msk [vmem:[#allocation2] sm:$0xff] %vm749, %v748
    // Predicated region
    $region18: #{tpu_custom_call.1} parent=1 // pred_check
      %p751 = pneg %p15
    $region19: #{tpu_custom_call.1} parent=1 // pred_check_branch
      %753 = sbr.rel (%p751) target = $region21
    $region20: #{tpu_custom_call.1} parent=1 // pred_region
      %v754 = vld [vmem:[#allocation2] sm:$0xff]
      %v755 = vld [vmem:[%s2] sm:$0xff]
      %757 = vset.pattern.permute.xlu0 0
      %758 = vperm.xlu0 %757, %v755
      %v759 = vpop.permute.xlu0 %758
      %v761 = vmul.f32 %v754, %v759
      %762 = vst.msk [vmem:[#allocation3] sm:$0xff] %vm749, %v761
    $region21: #{tpu_custom_call.1} parent=1 // pred_fallthru
      _
    // Predicated region
    $region22: #{tpu_custom_call.1} parent=1 // pred_check
      _
    $region23: #{tpu_custom_call.1} parent=1 // pred_check_branch
      %764 = sbr.rel (0) target = $region25
    $region24: #{tpu_custom_call.1} parent=1 // pred_region
      %s766 = ssub.s32 128, 128
      %767 = vsyncadd [#allocation4], %s766
      %s769 = sshll.u32 [#allocation3], 4
      %s770 = int_to_ptr.vmem [resolvable:$true] %s769
      %772 = dma.vmem_to_hbm [thread:$0]  %s770, 128, %s3, [#allocation4]
    $region25: #{tpu_custom_call.1} parent=1 // pred_fallthru
      _
    // Predicated region
    $region26: #{tpu_custom_call.1} parent=1 // pred_check
      _
    $region27: #{tpu_custom_call.1} parent=1 // pred_check_branch
      %774 = sbr.rel (0) target = $region29
    $region28: #{tpu_custom_call.1} parent=1 // pred_region
      %775 = dma.done [#allocation4], 128
    $region29: #{tpu_custom_call.1} parent=1 // pred_fallthru
      _
    %776 = vsyncpa [#allocation4], 1

</llo_original>
